<compile_context>
chip_gen: v5e
topology: v5e:2x2
jax: 0.10.0
libtpu: 0.0.40
codegen_flags: <defaults>
</compile_context>

<pallas_src>
import math

import jax
import jax.numpy as jnp
from jax.experimental import pallas as pl
from jax.experimental.pallas import tpu as pltpu


def _add_pe_kernel(x_ref, pe_ref, o_ref):
    """o = x + pe.  pe has 1, rb, or a divisor-of-rb number of rows."""
    rb = x_ref.shape[0]
    g = pe_ref.shape[0]
    pe = pe_ref[...]
    if g != rb and g != 1:
        # Repeat the G pe rows along sublanes to match the x block (static,
        # small, in-VMEM -- VPU/XLU slack is huge on this DMA-bound kernel).
        pe = jnp.concatenate([pe] * (rb // g), axis=0)
    o_ref[...] = x_ref[...] + pe


def make_positional_encoding(d_model: int, max_len: int = 512) -> jnp.ndarray:
    """Deterministic sinusoidal table, identical to the PyTorch __init__."""
    assert d_model % 2 == 0, "d_model must be even (same as the PyTorch module)"
    pos = jnp.arange(max_len, dtype=jnp.float32)[:, None]             # (max_len, 1)
    div = jnp.exp(
        jnp.arange(0, d_model, 2, dtype=jnp.float32)
        * (-math.log(10000.0) / d_model)
    )                                                                  # (d_model/2,)
    ang = pos * div                                                    # (max_len, d_model/2)
    # even columns = sin, odd columns = cos  (interleave)
    pe = jnp.stack([jnp.sin(ang), jnp.cos(ang)], axis=-1).reshape(max_len, d_model)
    return pe                                                          # (max_len, d_model)


def _cdiv(a: int, b: int) -> int:
    return -(-a // b)


def _pick_fold(batch: int, seq: int, d: int, sublane: int) -> int:
    """Factor G of S folded into the row axis so B*G fills sublanes while the
    flattened feature axis (S//G)*D stays lane-dense (>= 128)."""
    if batch >= sublane:
        return 1
    lane_ok = [g for g in range(1, seq + 1)
               if seq % g == 0 and (seq // g) * d >= 128]
    for g in lane_ok:                        # smallest G first: widest lanes
        if (batch * g) % sublane == 0:
            return g
    for g in lane_ok:
        if batch * g >= sublane:
            return g
    return 1                                 # no useful fold; stay lane-dense


def _plan_tiles(batch: int, seq: int, d: int, itemsize: int,
                target_bytes: int = 4 << 20):
    """Pick (fold G, rows, flat, row_tile, lane_tile, pe_resident)."""
    sublane = max(8, 32 // max(1, itemsize))       # 8 f32, 16 bf16, 32 int8
    g = _pick_fold(batch, seq, d, sublane)
    rows = batch * g
    flat = (seq // g) * d
    rb_min = math.lcm(g, sublane)
    row_bytes = flat * itemsize

    pe_resident = rb_min * row_bytes <= target_bytes
    if pe_resident:
        # Whole (folded) pe row stays resident; only the row axis is tiled.
        chunk = flat                                # == full array dim (legal)
        if rows <= rb_min:
            rb = rows                               # == full array dim (legal)
        else:
            units = max(1, target_bytes // (rb_min * row_bytes))
            rb = max(rb_min, min(units, rows // rb_min) * rb_min)
    else:
        # Rows are huge: keep the row tile minimal, tile lanes in 128s.
        rb = rows if rows < rb_min else rb_min
        chunk = max(128, (target_bytes // (rb * itemsize)) // 128 * 128)
        chunk = min(chunk, _cdiv(flat, 128) * 128)
    return g, rows, flat, rb, chunk, pe_resident


@jax.jit
def positional_encoding_forward(x: jnp.ndarray, pe: jnp.ndarray) -> jnp.ndarray:
    """x: (B, S, D) float array; pe: (max_len, D). Returns x + pe[None, :S, :]."""
    B, S, D = x.shape
    max_len = pe.shape[0]
    if S > max_len:
        raise ValueError(f"sequence length {S} exceeds max_len {max_len}")

    itemsize = jnp.dtype(x.dtype).itemsize
    G, rows, flat, rb, chunk, pe_resident = _plan_tiles(B, S, D, itemsize)

    # Fold G of S into the row axis (G == 1 -> plain (B, S*D) flatten).
    x2 = x.reshape(rows, flat)
    pe2 = pe[:S].astype(x.dtype).reshape(G, flat)

    if pe_resident:
        # pe block index is constant -> resident, never re-DMA'd; 1-D grid over
        # rows so x streams contiguously through HBM.
        grid = (_cdiv(rows, rb),)
        in_specs = [
            pl.BlockSpec((rb, chunk), lambda r: (r, 0)),    # x slab
            pl.BlockSpec((G, chunk), lambda r: (0, 0)),     # pe (resident)
        ]
        out_spec = pl.BlockSpec((rb, chunk), lambda r: (r, 0))
        dims = ("parallel",)
    else:
        # pe tiled along lanes; column axis outermost so the pe column block is
        # reused across the inner row loop.
        grid = (_cdiv(flat, chunk), _cdiv(rows, rb))
        in_specs = [
            pl.BlockSpec((rb, chunk), lambda c, r: (r, c)),  # x slab
            pl.BlockSpec((G, chunk), lambda c, r: (0, c)),   # pe (reused over r)
        ]
        out_spec = pl.BlockSpec((rb, chunk), lambda c, r: (r, c))
        dims = ("parallel", "parallel")

    out2 = pl.pallas_call(
        _add_pe_kernel,
        out_shape=jax.ShapeDtypeStruct((rows, flat), x.dtype),
        grid_spec=pltpu.PrefetchScalarGridSpec(
            num_scalar_prefetch=0,
            grid=grid,
            in_specs=in_specs,
            out_specs=out_spec,
        ),
        compiler_params=pltpu.CompilerParams(
            dimension_semantics=dims,
            vmem_limit_bytes=48 << 20,
        ),
        cost_estimate=pl.CostEstimate(
            flops=B * S * D,
            transcendentals=0,
            bytes_accessed=(2 * B * S * D + S * D) * itemsize,
        ),
    )(x2, pe2)

    return out2.reshape(B, S, D)


if __name__ == "__main__":
    B, S, D = 2, 8, 32
    MAX_LEN = 512

    key = jax.random.PRNGKey(0)
    x = jax.random.normal(key, (B, S, D), dtype=jnp.float32)

    pe = make_positional_encoding(D, MAX_LEN)

    out = jax.block_until_ready(positional_encoding_forward(x, pe))

    # sanity check against plain-JAX reference
    ref = x + pe[:S][None, :, :].astype(x.dtype)
    assert out.shape == (B, S, D)
    assert jnp.allclose(out, ref, atol=1e-6), "mismatch vs reference"

    print("KERNEL_OK")
</pallas_src>

<mosaic_0001>
module attributes {stable_mosaic.version = 11 : i64} {
  func.func @_add_pe_kernel(%arg0: i32, %arg1: memref<2x256xf32, #tpu.memory_space<vmem>>, %arg2: memref<1x256xf32, #tpu.memory_space<vmem>>, %arg3: memref<2x256xf32, #tpu.memory_space<vmem>>) attributes {dimension_semantics = [#tpu.dimension_semantics<parallel>], iteration_bounds = array<i64: 1>, scalar_prefetch = 0 : i64, scratch_operands = 0 : i64, tpu.core_type = #tpu.core_type<tc>, window_params = [{transform_indices = @transform_0, window_bounds = array<i64: 2, 256>}, {pipeline_mode = #tpu.pipeline_mode<synchronous>, transform_indices = @transform_1, window_bounds = array<i64: 1, 256>}, {transform_indices = @transform_2, window_bounds = array<i64: 2, 256>}]} {
    %c0 = arith.constant 0 : index
    %c0_0 = arith.constant 0 : index
    %0 = vector.load %arg2[%c0, %c0_0] : memref<1x256xf32, #tpu.memory_space<vmem>>, vector<1x256xf32>
    %c0_1 = arith.constant 0 : index
    %c0_2 = arith.constant 0 : index
    %1 = vector.load %arg1[%c0_1, %c0_2] : memref<2x256xf32, #tpu.memory_space<vmem>>, vector<2x256xf32>
    %2 = vector.broadcast %0 : vector<1x256xf32> to vector<2x256xf32>
    %3 = arith.addf %1, %2 : vector<2x256xf32>
    %c0_3 = arith.constant 0 : index
    %c0_4 = arith.constant 0 : index
    %4 = vector.load %arg3[%c0_3, %c0_4] : memref<2x256xf32, #tpu.memory_space<vmem>>, vector<2x256xf32>
    tpu.vector_store %arg3[%c0_3, %c0_4], %3 {strides = array<i32>} : memref<2x256xf32, #tpu.memory_space<vmem>>, vector<2x256xf32>,
    return
  }
  func.func @transform_0(%arg0: i32) -> (i32, i32) {
    %c0_i32 = arith.constant 0 : i32
    %c0_i32_0 = arith.constant 0 : i32
    return %arg0, %c0_i32 : i32, i32
  }
  func.func @transform_1(%arg0: i32) -> (i32, i32) {
    %c0_i32 = arith.constant 0 : i32
    %c0_i32_0 = arith.constant 0 : i32
    %c0_i32_1 = arith.constant 0 : i32
    return %c0_i32, %c0_i32_0 : i32, i32
  }
  func.func @transform_2(%arg0: i32) -> (i32, i32) {
    %c0_i32 = arith.constant 0 : i32
    %c0_i32_0 = arith.constant 0 : i32
    return %arg0, %c0_i32 : i32, i32
  }
}

</mosaic_0001>

<llo_original>
// kernel: positional_encoding_forward.1
$region0: #{positional_encoding_forward.1}
  #allocation0 [shape = 'u32[]', space=smem, size = 0x4, offset = 0x4, fixed_abs, tag = 'smem constant byte address 0x4 - core index']
  #allocation1 [shape = 'u32[72,128]{1,0:T(1,128)}', space=vmem, size = 0x9000, scoped, tag = 'internal scratch']
  %s0 = inlined_call_operand.vmem [shape: f32[2,256], index: 0, kind: input, shape index: {}]
  %s1 = inlined_call_operand.vmem [shape: f32[1,256], index: 1, kind: input, shape index: {}]
  %s2 = inlined_call_operand.vmem [shape: f32[2,256], index: 2, kind: output, shape index: {}]
  %s3 = sld [smem:[#allocation0]]
  $region18: #{positional_encoding_forward.1} parent=0
    _
  %s5 = ssub.s32 1, %s3
  %s6 = scalar_select 0, %s5, %s3
  // Predicated region
  $region2: #{positional_encoding_forward.1} parent=0 // pred_check
    _
  $region3: #{positional_encoding_forward.1} parent=0 // pred_check_branch
    %8 = sbr.rel (0) target = $region5
  $region4: #{positional_encoding_forward.1} parent=0 // pred_region
    _
  $region5: #{positional_encoding_forward.1} parent=0 // pred_fallthru
    _
  // Predicated region
  $region6: #{positional_encoding_forward.1} parent=0 // pred_check
    _
  $region7: #{positional_encoding_forward.1} parent=0 // pred_check_branch
    %10 = sbr.rel (0) target = $region9
  $region8: #{positional_encoding_forward.1} parent=0 // pred_region
    _
  $region9: #{positional_encoding_forward.1} parent=0 // pred_fallthru
    _
  %v11 = vld [vmem:[%s1] sm:$0x3]
  %v12 = vld [vmem:[%s0] sm:$0xf]
  %v14 = vperm.slane %v11, 0
  %v15 = vperm.slane %v11, 1
  %v16 = vrot.slane %v15, 6
  %vm17 = vcmask 1041408
  %v18 = vsel %vm17, %v14, %v16
  %v20 = vadd.f32 %v12, %v18
  %21 = vst [vmem:[%s2] sm:$0xf] %v20
  // Predicated region
  $region10: #{positional_encoding_forward.1} parent=0 // pred_check
    _
  $region11: #{positional_encoding_forward.1} parent=0 // pred_check_branch
    %23 = sbr.rel (0) target = $region13
  $region12: #{positional_encoding_forward.1} parent=0 // pred_region
    _
  $region13: #{positional_encoding_forward.1} parent=0 // pred_fallthru
    _
  // Predicated region
  $region14: #{positional_encoding_forward.1} parent=0 // pred_check
    _
  $region15: #{positional_encoding_forward.1} parent=0 // pred_check_branch
    %25 = sbr.rel (0) target = $region17
  $region16: #{positional_encoding_forward.1} parent=0 // pred_region
    _
  $region17: #{positional_encoding_forward.1} parent=0 // pred_fallthru
    _

</llo_original>
